<compile_context>
chip_gen: v6e
topology: v6e:2x2x1
jax: 0.10.0
libtpu: 0.0.40
codegen_flags: <defaults>
</compile_context>

<pallas_src>
import functools

import numpy as np
import jax
import jax.numpy as jnp
from jax import lax
from jax.experimental import pallas as pl
from jax.experimental.pallas import tpu as pltpu

LN_EPS = 1e-5                       # CLIP layer_norm_eps
TM_TARGET = 512                     # rows per grid step for projection/MLP matmuls
VMEM_LIMIT = 48 * 1024 * 1024       # <= v7x 64 MiB/TC physical; fine on v5e/v6e


# ------------------------------ helpers ------------------------------------ #

def _cparams(dims):
    return pltpu.CompilerParams(dimension_semantics=dims,
                                vmem_limit_bytes=VMEM_LIMIT)


def _nbytes(shape, dtype):
    return int(np.prod(shape)) * np.dtype(dtype).itemsize


def _m_tile(m):
    # Full block if it fits, else 512-row tiles (8-aligned; Pallas masks the edge).
    return m if m <= TM_TARGET else TM_TARGET


# ----------------------------- Pallas kernels ------------------------------ #

def _patch_embed_ln_kernel(x_ref, w_ref, add_ref, g_ref, b_ref, o_ref):
    # fused: patch matmul (row 0 is an all-zero CLS slot) + (cls|pos) add + LayerNorm
    emb = jnp.dot(x_ref[0], w_ref[...],
                  preferred_element_type=jnp.float32) + add_ref[...]     # [S, D] f32
    mu = jnp.mean(emb, axis=-1, keepdims=True)
    var = jnp.mean(jnp.square(emb - mu), axis=-1, keepdims=True)
    o_ref[0] = ((emb - mu) * lax.rsqrt(var + LN_EPS)
                * g_ref[...] + b_ref[...]).astype(o_ref.dtype)


def _ln_matmul_kernel(x_ref, g_ref, b_ref, w_ref, bias_ref, o_ref, *, gelu):
    # fused LayerNorm -> matmul (+ bias) (+ quick_gelu); full weight block resident,
    # so the LN of this (tm, K) block is computed exactly once.
    x = x_ref[...].astype(jnp.float32)                                  # [tm, K]
    mu = jnp.mean(x, axis=-1, keepdims=True)
    var = jnp.mean(jnp.square(x - mu), axis=-1, keepdims=True)
    xn = ((x - mu) * lax.rsqrt(var + LN_EPS)
          * g_ref[...] + b_ref[...]).astype(jnp.bfloat16)
    y = jnp.dot(xn, w_ref[...], preferred_element_type=jnp.float32) + bias_ref[...]
    if gelu:
        y = y * jax.nn.sigmoid(1.702 * y)                               # CLIP quick_gelu
    o_ref[...] = y.astype(o_ref.dtype)


def _matmul_bias_residual_kernel(x_ref, w_ref, bias_ref, r_ref, o_ref):
    # y = x @ w + bias + residual; full weight block, no K tiling needed (K <= 4096)
    y = jnp.dot(x_ref[...], w_ref[...], preferred_element_type=jnp.float32)
    o_ref[...] = (y + bias_ref[...] + r_ref[...].astype(jnp.float32)).astype(o_ref.dtype)


def _attention_kernel(q_ref, k_ref, v_ref, o_ref, *, hg, dh, scale):
    # One (batch, head-group, q-tile) per grid step.
    #   q_ref: [1, tq, hg*dh]   k_ref / v_ref: [1, S, hg*dh]   o_ref: [1, tq, hg*dh]
    # Q/K stay bf16 on the MXU; scale is applied to the f32 scores.
    outs = []
    for i in range(hg):                                  # hg is small (1-4)
        lo, hi = i * dh, (i + 1) * dh
        q = q_ref[0, :, lo:hi]                           # [tq, dh] bf16
        k = k_ref[0, :, lo:hi]                           # [S, dh]  bf16
        v = v_ref[0, :, lo:hi]                           # [S, dh]  bf16
        s = lax.dot_general(q, k, (((1,), (1,)), ((), ())),
                            preferred_element_type=jnp.float32) * scale  # [tq, S] f32
        m = jnp.max(s, axis=-1, keepdims=True)
        p = jnp.exp(s - m)
        denom = jnp.sum(p, axis=-1, keepdims=True)
        p = p * pl.reciprocal(denom, approx=True)        # EUP recip
        outs.append(jnp.dot(p.astype(v.dtype), v,
                            preferred_element_type=jnp.float32))          # [tq, dh]
    out = outs[0] if hg == 1 else jnp.concatenate(outs, axis=-1)          # [tq, hg*dh]
    o_ref[0] = out.astype(o_ref.dtype)                   # single lane-dense store


# ----------------------------- Pallas wrappers ----------------------------- #

def patch_embed_ln(x, w, addend, g, b, *, out_dtype=jnp.bfloat16):
    """LN(x @ w + addend) per image.  x:[B,S,Kp] bf16 (row 0 zeros = CLS slot),
    w:[Kp,D] bf16, addend:[S,D] f32 (row 0 = cls+pos[0], rows 1: = pos[1:])."""
    B, S, Kp = x.shape
    D = w.shape[1]
    return pl.pallas_call(
        _patch_embed_ln_kernel,
        out_shape=jax.ShapeDtypeStruct((B, S, D), out_dtype),
        grid=(B,),
        in_specs=[pl.BlockSpec((1, S, Kp), lambda i: (i, 0, 0)),
                  pl.BlockSpec((Kp, D), lambda i: (0, 0)),
                  pl.BlockSpec((S, D), lambda i: (0, 0)),
                  pl.BlockSpec((1, D), lambda i: (0, 0)),
                  pl.BlockSpec((1, D), lambda i: (0, 0))],
        out_specs=pl.BlockSpec((1, S, D), lambda i: (i, 0, 0)),
        compiler_params=_cparams(("parallel",)),
        cost_estimate=pl.CostEstimate(
            flops=2 * B * S * Kp * D, transcendentals=0,
            bytes_accessed=_nbytes(x.shape, x.dtype) + _nbytes(w.shape, w.dtype)
            + _nbytes(addend.shape, addend.dtype) + _nbytes((B, S, D), out_dtype)),
    )(x, w, addend, g, b)


def ln_matmul(x, g, b, w, bias, *, gelu, out_dtype=jnp.bfloat16):
    """y = (quick_gelu?)(LayerNorm(x) @ w + bias).  Weight fully VMEM-resident."""
    M, K = x.shape
    N = w.shape[1]
    tm = _m_tile(M)
    return pl.pallas_call(
        functools.partial(_ln_matmul_kernel, gelu=gelu),
        out_shape=jax.ShapeDtypeStruct((M, N), out_dtype),
        grid=(pl.cdiv(M, tm),),
        in_specs=[pl.BlockSpec((tm, K), lambda i: (i, 0)),
                  pl.BlockSpec((1, K), lambda i: (0, 0)),
                  pl.BlockSpec((1, K), lambda i: (0, 0)),
                  pl.BlockSpec((K, N), lambda i: (0, 0)),
                  pl.BlockSpec((1, N), lambda i: (0, 0))],
        out_specs=pl.BlockSpec((tm, N), lambda i: (i, 0)),
        compiler_params=_cparams(("parallel",)),
        cost_estimate=pl.CostEstimate(
            flops=2 * M * N * K, transcendentals=(M * N if gelu else 0),
            bytes_accessed=_nbytes(x.shape, x.dtype) + _nbytes(w.shape, w.dtype)
            + _nbytes((M, N), out_dtype)),
    )(x, g, b, w, bias)


def matmul_bias_residual(x, w, bias, residual, *, out_dtype=jnp.bfloat16):
    """y = x @ w + bias + residual.  Weight fully VMEM-resident, grid over M only."""
    M, K = x.shape
    N = w.shape[1]
    tm = _m_tile(M)
    return pl.pallas_call(
        _matmul_bias_residual_kernel,
        out_shape=jax.ShapeDtypeStruct((M, N), out_dtype),
        grid=(pl.cdiv(M, tm),),
        in_specs=[pl.BlockSpec((tm, K), lambda i: (i, 0)),
                  pl.BlockSpec((K, N), lambda i: (0, 0)),
                  pl.BlockSpec((1, N), lambda i: (0, 0)),
                  pl.BlockSpec((tm, N), lambda i: (i, 0))],
        out_specs=pl.BlockSpec((tm, N), lambda i: (i, 0)),
        compiler_params=_cparams(("parallel",)),
        cost_estimate=pl.CostEstimate(
            flops=2 * M * N * K, transcendentals=0,
            bytes_accessed=_nbytes(x.shape, x.dtype) + _nbytes(w.shape, w.dtype)
            + _nbytes(residual.shape, residual.dtype) + _nbytes((M, N), out_dtype)),
    )(x, w, bias, residual)


def attention(qkv, heads, dh, *, out_dtype=jnp.bfloat16):
    """qkv: [B, S, 3*D] laid out [q|k|v], each D = heads*dh with heads contiguous.
    Returns [B, S, D].  Grid = (B, head_groups, q_tiles), all parallel."""
    B, S, three_d = qkv.shape
    D = heads * dh
    assert three_d == 3 * D
    # Smallest head group whose lane width is a multiple of 128 (lane-dense I/O).
    hg = heads
    for cand in range(1, heads + 1):
        if heads % cand == 0 and (cand * dh) % 128 == 0:
            hg = cand
            break
    hgw = hg * dh
    n_hg = heads // hg
    tq = S if S <= 256 else 128          # q-tile keeps the [tq,S] scores near the vregs
    scale = dh ** -0.5
    return pl.pallas_call(
        functools.partial(_attention_kernel, hg=hg, dh=dh, scale=scale),
        out_shape=jax.ShapeDtypeStruct((B, S, D), out_dtype),
        grid=(B, n_hg, pl.cdiv(S, tq)),
        in_specs=[
            # Q tile changes every step; K/V blocks ignore the q index so they stay
            # resident in VMEM across the inner q_tiles loop.
            pl.BlockSpec((1, tq, hgw), lambda b, g, qi: (b, qi, g)),
            pl.BlockSpec((1, S, hgw), lambda b, g, qi: (b, 0, n_hg + g)),
            pl.BlockSpec((1, S, hgw), lambda b, g, qi: (b, 0, 2 * n_hg + g)),
        ],
        out_specs=pl.BlockSpec((1, tq, hgw), lambda b, g, qi: (b, qi, g)),
        compiler_params=_cparams(("parallel", "parallel", "parallel")),
        cost_estimate=pl.CostEstimate(
            flops=4 * B * heads * S * S * dh,
            transcendentals=B * heads * S * S,
            bytes_accessed=3 * _nbytes(qkv.shape, qkv.dtype)
            + _nbytes((B, S, D), out_dtype)),
    )(qkv, qkv, qkv)


# ------------------------------- parameters -------------------------------- #

def init_params(key, cfg):
    C, p, D = cfg["channels"], cfg["patch_size"], cfg["hidden"]
    I, L = cfg["inter"], cfg["num_layers"]
    S = (cfg["image_size"] // p) ** 2 + 1

    def nrm(k, shape, dtype=jnp.bfloat16):
        return (0.02 * jax.random.normal(k, shape, dtype=jnp.float32)).astype(dtype)

    keys = jax.random.split(key, 4 + L)
    params = {
        "patch_w": nrm(keys[0], (C * p * p, D)),             # conv-as-matmul, bias=False
        "class_embedding": nrm(keys[1], (D,), jnp.float32),
        "pos_embedding": nrm(keys[2], (S, D), jnp.float32),
        "pre_ln_g": jnp.ones((1, D), jnp.float32),
        "pre_ln_b": jnp.zeros((1, D), jnp.float32),
        "layers": [],
    }
    for l in range(L):
        lk = jax.random.split(keys[4 + l], 6)
        qkv_w = jnp.concatenate(
            [nrm(lk[0], (D, D)), nrm(lk[1], (D, D)), nrm(lk[2], (D, D))], axis=1)
        params["layers"].append({
            "ln1_g": jnp.ones((1, D), jnp.float32), "ln1_b": jnp.zeros((1, D), jnp.float32),
            "qkv_w": qkv_w, "qkv_b": jnp.zeros((1, 3 * D), jnp.float32),
            "o_w": nrm(lk[3], (D, D)), "o_b": jnp.zeros((1, D), jnp.float32),
            "ln2_g": jnp.ones((1, D), jnp.float32), "ln2_b": jnp.zeros((1, D), jnp.float32),
            "fc1_w": nrm(lk[4], (D, I)), "fc1_b": jnp.zeros((1, I), jnp.float32),
            "fc2_w": nrm(lk[5], (I, D)), "fc2_b": jnp.zeros((1, D), jnp.float32),
        })
    return params


# -------------------------------- forward ---------------------------------- #

def clip_vision_tower_forward(images, params, cfg):
    # TODO(synk): the list-of-images branch of CLIPVisionTower.forward (per-image
    # unsqueeze(0) loop) is not implemented; only the batched-tensor path is.
    B, C, H, W = images.shape
    p = cfg["patch_size"]
    nH, nW = H // p, W // p
    nP = nH * nW
    D = cfg["hidden"]
    heads = cfg["heads"]
    Dh = D // heads
    S = nP + 1
    M = B * S

    # --- patch extraction (pure XLA reshuffle), K padded to a lane multiple,
    #     plus a leading all-zero row per image standing in for the CLS slot ---
    K0 = C * p * p
    Kp = ((K0 + 127) // 128) * 128
    x = images.astype(jnp.bfloat16)
    # flatten patches in (c, dy, dx) order to match torch Conv2d weight [D,C,p,p]
    x = x.reshape(B, C, nH, p, nW, p).transpose(0, 2, 4, 1, 3, 5).reshape(B, nP, K0)
    x = jnp.pad(x, ((0, 0), (1, 0), (0, Kp - K0)))                       # [B, S, Kp]
    w = jnp.pad(params["patch_w"], ((0, Kp - K0), (0, 0)))               # [Kp, D] bf16

    # row 0 = class_embedding + pos[0]; rows 1: = pos[1:]   (tiny XLA op)
    addend = jnp.concatenate(
        [params["class_embedding"].reshape(1, D) + params["pos_embedding"][:1],
         params["pos_embedding"][1:]], axis=0)                           # [S, D] f32

    # fused patch conv + CLS/pos add + pre_layrnorm  ->  hidden_states[0]
    hidden = patch_embed_ln(x, w, addend,
                            params["pre_ln_g"], params["pre_ln_b"]).reshape(M, D)

    # Only hidden_states[sel_idx] is needed; layers past it cannot affect output.
    L = len(params["layers"])
    sel = cfg["select_layer"]
    sel_idx = sel if sel >= 0 else (L + 1) + sel
    assert 0 <= sel_idx <= L, f"select_layer {sel} out of range"

    for li in range(sel_idx):          # run layers 0 .. sel_idx-1
        lp = params["layers"][li]

        # --- self attention block (LN1 fused into the single QKV projection) ---
        residual = hidden                                                # [M, D] bf16
        qkv = ln_matmul(residual, lp["ln1_g"], lp["ln1_b"],
                        lp["qkv_w"], lp["qkv_b"], gelu=False)            # [M, 3D]
        attn = attention(qkv.reshape(B, S, 3 * D), heads, Dh)            # [B, S, D]
        hidden = matmul_bias_residual(attn.reshape(M, D),
                                      lp["o_w"], lp["o_b"], residual)

        # --- MLP block (LN2 + bias + quick_gelu fused into fc1) ---
        residual = hidden
        h1 = ln_matmul(residual, lp["ln2_g"], lp["ln2_b"],
                       lp["fc1_w"], lp["fc1_b"], gelu=True)              # [M, I]
        hidden = matmul_bias_residual(h1, lp["fc2_w"], lp["fc2_b"], residual)

    feats = hidden.reshape(B, S, D)      # == hidden_states[sel_idx]
    if cfg["select_feature"] == "patch":
        feats = feats[:, 1:]
    elif cfg["select_feature"] != "cls_patch":
        raise ValueError(f"Unexpected select feature: {cfg['select_feature']}")
    return feats.astype(images.dtype)


# ---------------------------------- main ------------------------------------ #

if __name__ == "__main__":
    cfg = dict(
        image_size=32, patch_size=4, channels=3,
        hidden=128, heads=4, inter=512, num_layers=3,
        select_layer=-2, select_feature="patch",
    )
    key = jax.random.PRNGKey(0)
    pkey, ikey = jax.random.split(key)
    params = init_params(pkey, cfg)
    images = jax.random.normal(
        ikey, (2, cfg["channels"], cfg["image_size"], cfg["image_size"]),
        dtype=jnp.float32)

    feats = clip_vision_tower_forward(images, params, cfg)
    jax.block_until_ready(feats)

    n_patches = (cfg["image_size"] // cfg["patch_size"]) ** 2
    assert feats.shape == (2, n_patches, cfg["hidden"]), feats.shape
    assert feats.dtype == images.dtype
    assert bool(jnp.all(jnp.isfinite(feats)))
    print("KERNEL_OK")
</pallas_src>

<mosaic_0001>
module attributes {stable_mosaic.version = 11 : i64} {
  func.func @_patch_embed_ln_kernel(%arg0: i32, %arg1: memref<1x65x128xbf16, #tpu.memory_space<vmem>>, %arg2: memref<128x128xbf16, #tpu.memory_space<vmem>>, %arg3: memref<65x128xf32, #tpu.memory_space<vmem>>, %arg4: memref<1x128xf32, #tpu.memory_space<vmem>>, %arg5: memref<1x128xf32, #tpu.memory_space<vmem>>, %arg6: memref<1x65x128xbf16, #tpu.memory_space<vmem>>) attributes {dimension_semantics = [#tpu.dimension_semantics<parallel>], iteration_bounds = array<i64: 2>, scalar_prefetch = 0 : i64, scratch_operands = 0 : i64, tpu.core_type = #tpu.core_type<tc>, window_params = [{transform_indices = @transform_0, window_bounds = array<i64: 1, 65, 128>}, {pipeline_mode = #tpu.pipeline_mode<synchronous>, transform_indices = @transform_1, window_bounds = array<i64: 128, 128>}, {pipeline_mode = #tpu.pipeline_mode<synchronous>, transform_indices = @transform_2, window_bounds = array<i64: 65, 128>}, {pipeline_mode = #tpu.pipeline_mode<synchronous>, transform_indices = @transform_3, window_bounds = array<i64: 1, 128>}, {pipeline_mode = #tpu.pipeline_mode<synchronous>, transform_indices = @transform_4, window_bounds = array<i64: 1, 128>}, {transform_indices = @transform_5, window_bounds = array<i64: 1, 65, 128>}]} {
    %c0 = arith.constant 0 : index
    %c0_0 = arith.constant 0 : index
    %c0_1 = arith.constant 0 : index
    %0 = vector.load %arg1[%c0, %c0_0, %c0_1] : memref<1x65x128xbf16, #tpu.memory_space<vmem>>, vector<1x65x128xbf16>
    %1 = vector.shape_cast %0 : vector<1x65x128xbf16> to vector<65x128xbf16>
    %c0_2 = arith.constant 0 : index
    %c0_3 = arith.constant 0 : index
    %2 = vector.load %arg2[%c0_2, %c0_3] : memref<128x128xbf16, #tpu.memory_space<vmem>>, vector<128x128xbf16>
    %cst = arith.constant dense<0.000000e+00> : vector<65x128xf32>
    %3 = tpu.matmul %1, %2, %cst {dimension_numbers = #tpu.dot_dimension_numbers<[1], [0], [0], [1], [0, 0, 1, 1], [], []>} : vector<65x128xbf16>, vector<128x128xbf16>, vector<65x128xf32> -> vector<65x128xf32>
    %c0_4 = arith.constant 0 : index
    %c0_5 = arith.constant 0 : index
    %4 = vector.load %arg3[%c0_4, %c0_5] : memref<65x128xf32, #tpu.memory_space<vmem>>, vector<65x128xf32>
    %5 = arith.addf %3, %4 : vector<65x128xf32>
    %cst_6 = arith.constant dense<0.000000e+00> : vector<65xf32>
    %6 = vector.multi_reduction <add>, %5, %cst_6 [1] : vector<65x128xf32> to vector<65xf32>
    %7 = vector.shape_cast %6 : vector<65xf32> to vector<65x1xf32>
    %cst_7 = arith.constant 1.280000e+02 : f32
    %8 = vector.broadcast %cst_7 : f32 to vector<65x1xf32>
    %9 = arith.divf %7, %8 : vector<65x1xf32>
    %10 = vector.broadcast %9 : vector<65x1xf32> to vector<65x128xf32>
    %11 = arith.subf %5, %10 : vector<65x128xf32>
    %12 = arith.mulf %11, %11 : vector<65x128xf32>
    %cst_8 = arith.constant dense<0.000000e+00> : vector<65xf32>
    %13 = vector.multi_reduction <add>, %12, %cst_8 [1] : vector<65x128xf32> to vector<65xf32>
    %14 = vector.shape_cast %13 : vector<65xf32> to vector<65x1xf32>
    %cst_9 = arith.constant 1.280000e+02 : f32
    %15 = vector.broadcast %cst_9 : f32 to vector<65x1xf32>
    %16 = arith.divf %14, %15 : vector<65x1xf32>
    %17 = vector.broadcast %9 : vector<65x1xf32> to vector<65x128xf32>
    %18 = arith.subf %5, %17 : vector<65x128xf32>
    %cst_10 = arith.constant 9.99999974E-6 : f32
    %19 = vector.broadcast %cst_10 : f32 to vector<65x1xf32>
    %20 = arith.addf %16, %19 : vector<65x1xf32>
    %21 = math.rsqrt %20 : vector<65x1xf32>
    %22 = vector.broadcast %21 : vector<65x1xf32> to vector<65x128xf32>
    %23 = arith.mulf %18, %22 : vector<65x128xf32>
    %c0_11 = arith.constant 0 : index
    %c0_12 = arith.constant 0 : index
    %24 = vector.load %arg4[%c0_11, %c0_12] : memref<1x128xf32, #tpu.memory_space<vmem>>, vector<1x128xf32>
    %25 = vector.broadcast %24 : vector<1x128xf32> to vector<65x128xf32>
    %26 = arith.mulf %23, %25 : vector<65x128xf32>
    %c0_13 = arith.constant 0 : index
    %c0_14 = arith.constant 0 : index
    %27 = vector.load %arg5[%c0_13, %c0_14] : memref<1x128xf32, #tpu.memory_space<vmem>>, vector<1x128xf32>
    %28 = vector.broadcast %27 : vector<1x128xf32> to vector<65x128xf32>
    %29 = arith.addf %26, %28 : vector<65x128xf32>
    %30 = arith.truncf %29 : vector<65x128xf32> to vector<65x128xbf16>
    %c0_15 = arith.constant 0 : index
    %c0_16 = arith.constant 0 : index
    %c0_17 = arith.constant 0 : index
    %31 = vector.load %arg6[%c0_15, %c0_16, %c0_17] : memref<1x65x128xbf16, #tpu.memory_space<vmem>>, vector<1x65x128xbf16>
    %32 = vector.shape_cast %31 : vector<1x65x128xbf16> to vector<65x128xbf16>
    %33 = vector.shape_cast %30 : vector<65x128xbf16> to vector<1x65x128xbf16>
    tpu.vector_store %arg6[%c0_15, %c0_16, %c0_17], %33 {strides = array<i32>} : memref<1x65x128xbf16, #tpu.memory_space<vmem>>, vector<1x65x128xbf16>,
    return
  }
  func.func @transform_0(%arg0: i32) -> (i32, i32, i32) {
    %c0_i32 = arith.constant 0 : i32
    %c0_i32_0 = arith.constant 0 : i32
    %c0_i32_1 = arith.constant 0 : i32
    return %arg0, %c0_i32, %c0_i32_0 : i32, i32, i32
  }
  func.func @transform_1(%arg0: i32) -> (i32, i32) {
    %c0_i32 = arith.constant 0 : i32
    %c0_i32_0 = arith.constant 0 : i32
    %c0_i32_1 = arith.constant 0 : i32
    return %c0_i32, %c0_i32_0 : i32, i32
  }
  func.func @transform_2(%arg0: i32) -> (i32, i32) {
    %c0_i32 = arith.constant 0 : i32
    %c0_i32_0 = arith.constant 0 : i32
    %c0_i32_1 = arith.constant 0 : i32
    return %c0_i32, %c0_i32_0 : i32, i32
  }
  func.func @transform_3(%arg0: i32) -> (i32, i32) {
    %c0_i32 = arith.constant 0 : i32
    %c0_i32_0 = arith.constant 0 : i32
    %c0_i32_1 = arith.constant 0 : i32
    return %c0_i32, %c0_i32_0 : i32, i32
  }
  func.func @transform_4(%arg0: i32) -> (i32, i32) {
    %c0_i32 = arith.constant 0 : i32
    %c0_i32_0 = arith.constant 0 : i32
    %c0_i32_1 = arith.constant 0 : i32
    return %c0_i32, %c0_i32_0 : i32, i32
  }
  func.func @transform_5(%arg0: i32) -> (i32, i32, i32) {
    %c0_i32 = arith.constant 0 : i32
    %c0_i32_0 = arith.constant 0 : i32
    %c0_i32_1 = arith.constant 0 : i32
    return %arg0, %c0_i32, %c0_i32_0 : i32, i32, i32
  }
}

</mosaic_0001>

<llo_original>
// kernel: tpu_custom_call.1
$region0: #{tpu_custom_call.1}
  #allocation0 [shape = 'u32[]', space=smem, size = 0x4, offset = 0x4, fixed_abs, tag = 'smem constant byte address 0x4 - core index']
  #allocation1 [shape = 'u32[144,128]{1,0:T(1,128)}', space=vmem, size = 0x12000, scoped, tag = 'internal scratch']
  %s0 = inlined_call_operand.vmem [shape: bf16[2,65,128], index: 0, kind: input, shape index: {}]
  %s1 = inlined_call_operand.vmem [shape: bf16[128,128], index: 1, kind: input, shape index: {}]
  %s2 = inlined_call_operand.vmem [shape: f32[65,128], index: 2, kind: input, shape index: {}]
  %s3 = inlined_call_operand.vmem [shape: f32[1,128], index: 3, kind: input, shape index: {}]
  %s4 = inlined_call_operand.vmem [shape: f32[1,128], index: 4, kind: input, shape index: {}]
  %s5 = inlined_call_operand.vmem [shape: bf16[2,65,128], index: 5, kind: output, shape index: {}]
  %s6 = sld [smem:[#allocation0]]
  $region53: #{tpu_custom_call.1} parent=0
    _
  %s8 = ssub.s32 1, %s6
  %s9 = scalar_select 0, %s8, %s6
  loop: start=0, step=1, limit=4
  $region2: #{tpu_custom_call.1} parent=0 // loop_pre_header
    _
  $region3: #{tpu_custom_call.1} parent=0 // loop_header
    %s11 = sphi 0, %s15
    %p12 = scmp.ge.s32.totalorder %s11, 4
    %s21 = sphi 0, %s23
    %s24 = sphi 0, %s21
    %s25 = sphi 0, %s24
    %s41 = sphi 0, %s25
    %s45 = sphi 0, %s45
    %s47 = sphi 0, %s45
    %s48 = sphi 0, %s47
    %s62 = sphi 0, %s48
    %s66 = sphi 0, %s66
    %s68 = sphi 0, %s66
    %s69 = sphi 0, %s68
    %s83 = sphi 0, %s69
    %s87 = sphi 0, %s87
    %s89 = sphi 0, %s87
    %s90 = sphi 0, %s89
    %s104 = sphi 0, %s90
    %s108 = sphi 0, %s108
    %s110 = sphi 0, %s108
    %s111 = sphi 0, %s110
    %s125 = sphi 0, %s111
    %s131 = sphi 0, %s133
    %s134 = sphi 0, %s131
    %s135 = sphi 0, %s134
    %s151 = sphi 0, %s135
  $region4: #{tpu_custom_call.1} parent=0 // loop_header_branch
    %14 = sbr.rel (%p12) target = $region8
  $region5: #{tpu_custom_call.1} parent=0 // loop_body
    %s16 = ssub.s32 %s11, 1
    %s17 = ssub.s32 %s11, 2
    %s18 = sadd.s32 %s11, 1
    %s19 = ssub.s32 %s11, %s18
    %p20 = scmp.eq.s32.totalorder %s19, 0
    %s22 = sadd.s32 %s21, 1
    %s23 = scalar_select %p20, %s21, %s22
    %p26 = pneg %p20
    %p27 = scmp.eq.s32.totalorder %s11, 1
    %p28 = por %p26, %p27
    %p29 = scmp.ne.s32.totalorder %s21, %s24
    %p30 = scmp.eq.s32.totalorder %s11, 0
    %p31 = por %p29, %p30
    %p32 = scmp.ne.s32.totalorder %s21, %s24
    %p33 = scmp.eq.s32.totalorder %s16, 1
    %p34 = por %p32, %p33
    %p35 = scmp.ne.s32.totalorder %s24, %s25
    %p36 = scmp.eq.s32.totalorder %s16, 0
    %p37 = por %p35, %p36
    %p38 = scmp.ne.s32.totalorder %s24, %s25
    %p39 = scmp.eq.s32.totalorder %s17, 1
    %p40 = por %p38, %p39
    %p42 = scmp.ne.s32.totalorder %s25, %s41
    %p43 = scmp.eq.s32.totalorder %s17, 0
    %p44 = por %p42, %p43
    %s46 = sadd.s32 %s45, 1
    %p49 = scmp.eq.s32.totalorder %s11, 1
    %p50 = scmp.ne.s32.totalorder %s45, %s47
    %p51 = scmp.eq.s32.totalorder %s11, 0
    %p52 = por %p50, %p51
    %p53 = scmp.ne.s32.totalorder %s45, %s47
    %p54 = scmp.eq.s32.totalorder %s16, 1
    %p55 = por %p53, %p54
    %p56 = scmp.ne.s32.totalorder %s47, %s48
    %p57 = scmp.eq.s32.totalorder %s16, 0
    %p58 = por %p56, %p57
    %p59 = scmp.ne.s32.totalorder %s47, %s48
    %p60 = scmp.eq.s32.totalorder %s17, 1
    %p61 = por %p59, %p60
    %p63 = scmp.ne.s32.totalorder %s48, %s62
    %p64 = scmp.eq.s32.totalorder %s17, 0
    %p65 = por %p63, %p64
    %s67 = sadd.s32 %s66, 1
    %p70 = scmp.eq.s32.totalorder %s11, 1
    %p71 = scmp.ne.s32.totalorder %s66, %s68
    %p72 = scmp.eq.s32.totalorder %s11, 0
    %p73 = por %p71, %p72
    %p74 = scmp.ne.s32.totalorder %s66, %s68
    %p75 = scmp.eq.s32.totalorder %s16, 1
    %p76 = por %p74, %p75
    %p77 = scmp.ne.s32.totalorder %s68, %s69
    %p78 = scmp.eq.s32.totalorder %s16, 0
    %p79 = por %p77, %p78
    %p80 = scmp.ne.s32.totalorder %s68, %s69
    %p81 = scmp.eq.s32.totalorder %s17, 1
    %p82 = por %p80, %p81
    %p84 = scmp.ne.s32.totalorder %s69, %s83
    %p85 = scmp.eq.s32.totalorder %s17, 0
    %p86 = por %p84, %p85
    %s88 = sadd.s32 %s87, 1
    %p91 = scmp.eq.s32.totalorder %s11, 1
    %p92 = scmp.ne.s32.totalorder %s87, %s89
    %p93 = scmp.eq.s32.totalorder %s11, 0
    %p94 = por %p92, %p93
    %p95 = scmp.ne.s32.totalorder %s87, %s89
    %p96 = scmp.eq.s32.totalorder %s16, 1
    %p97 = por %p95, %p96
    %p98 = scmp.ne.s32.totalorder %s89, %s90
    %p99 = scmp.eq.s32.totalorder %s16, 0
    %p100 = por %p98, %p99
    %p101 = scmp.ne.s32.totalorder %s89, %s90
    %p102 = scmp.eq.s32.totalorder %s17, 1
    %p103 = por %p101, %p102
    %p105 = scmp.ne.s32.totalorder %s90, %s104
    %p106 = scmp.eq.s32.totalorder %s17, 0
    %p107 = por %p105, %p106
    %s109 = sadd.s32 %s108, 1
    %p112 = scmp.eq.s32.totalorder %s11, 1
    %p113 = scmp.ne.s32.totalorder %s108, %s110
    %p114 = scmp.eq.s32.totalorder %s11, 0
    %p115 = por %p113, %p114
    %p116 = scmp.ne.s32.totalorder %s108, %s110
    %p117 = scmp.eq.s32.totalorder %s16, 1
    %p118 = por %p116, %p117
    %p119 = scmp.ne.s32.totalorder %s110, %s111
    %p120 = scmp.eq.s32.totalorder %s16, 0
    %p121 = por %p119, %p120
    %p122 = scmp.ne.s32.totalorder %s110, %s111
    %p123 = scmp.eq.s32.totalorder %s17, 1
    %p124 = por %p122, %p123
    %p126 = scmp.ne.s32.totalorder %s111, %s125
    %p127 = scmp.eq.s32.totalorder %s17, 0
    %p128 = por %p126, %p127
    %s129 = ssub.s32 %s11, %s18
    %p130 = scmp.eq.s32.totalorder %s129, 0
    %s132 = sadd.s32 %s131, 1
    %s133 = scalar_select %p130, %s131, %s132
    %p136 = pneg %p130
    %p137 = scmp.eq.s32.totalorder %s11, 1
    %p138 = por %p136, %p137
    %p139 = scmp.ne.s32.totalorder %s131, %s134
    %p140 = scmp.eq.s32.totalorder %s11, 0
    %p141 = por %p139, %p140
    %p142 = scmp.ne.s32.totalorder %s131, %s134
    %p143 = scmp.eq.s32.totalorder %s16, 1
    %p144 = por %p142, %p143
    %p145 = scmp.ne.s32.totalorder %s134, %s135
    %p146 = scmp.eq.s32.totalorder %s16, 0
    %p147 = por %p145, %p146
    %p148 = scmp.ne.s32.totalorder %s134, %s135
    %p149 = scmp.eq.s32.totalorder %s17, 1
    %p150 = por %p148, %p149
    %p152 = scmp.ne.s32.totalorder %s135, %s151
    %p153 = scmp.eq.s32.totalorder %s17, 0
    %p154 = por %p152, %p153
    %p155 = scmp.le.s32.totalorder 1, %s11
    %p156 = scmp.lt.s32.totalorder %s11, 3
    %p157 = pnand %p155, %p156
    %p158 = pneg %p157
    // Predicated region
    $region9: #{tpu_custom_call.1} parent=5 // pred_check
      _
    $region10: #{tpu_custom_call.1} parent=5 // pred_check_branch
      %160 = sbr.rel (%p157) target = $region12
    $region11: #{tpu_custom_call.1} parent=5 // pred_region
      %s161 = ssub.s32 %s11, 1
      // Predicated region
      $region13: #{tpu_custom_call.1} parent=11 // pred_check
        %p162 = pneg %p58
      $region14: #{tpu_custom_call.1} parent=11 // pred_check_branch
        %164 = sbr.rel (%p162) target = $region16
      $region15: #{tpu_custom_call.1} parent=11 // pred_region
        _
      $region16: #{tpu_custom_call.1} parent=11 // pred_fallthru
        _
      // Predicated region
      $region17: #{tpu_custom_call.1} parent=11 // pred_check
        %p165 = pneg %p79
      $region18: #{tpu_custom_call.1} parent=11 // pred_check_branch
        %167 = sbr.rel (%p165) target = $region20
      $region19: #{tpu_custom_call.1} parent=11 // pred_region
        _
      $region20: #{tpu_custom_call.1} parent=11 // pred_fallthru
        _
      // Predicated region
      $region21: #{tpu_custom_call.1} parent=11 // pred_check
        %p168 = pneg %p100
      $region22: #{tpu_custom_call.1} parent=11 // pred_check_branch
        %170 = sbr.rel (%p168) target = $region24
      $region23: #{tpu_custom_call.1} parent=11 // pred_region
        _
      $region24: #{tpu_custom_call.1} parent=11 // pred_fallthru
        _
      // Predicated region
      $region25: #{tpu_custom_call.1} parent=11 // pred_check
        %p171 = pneg %p121
      $region26: #{tpu_custom_call.1} parent=11 // pred_check_branch
        %173 = sbr.rel (%p171) target = $region28
      $region27: #{tpu_custom_call.1} parent=11 // pred_region
        _
      $region28: #{tpu_custom_call.1} parent=11 // pred_fallthru
        _
    $region12: #{tpu_custom_call.1} parent=5 // pred_fallthru
      _
    %p174 = scmp.lt.s32.totalorder %s11, 2
    // Predicated region
    $region29: #{tpu_custom_call.1} parent=5 // pred_check
      %p175 = pneg %p174
    $region30: #{tpu_custom_call.1} parent=5 // pred_check_branch
      %177 = sbr.rel (%p175) target = $region32
    $region31: #{tpu_custom_call.1} parent=5 // pred_region
      // Predicated region
      $region33: #{tpu_custom_call.1} parent=31 // pred_check
        %p178 = pneg %p31
      $region34: #{tpu_custom_call.1} parent=31 // pred_check_branch
        %180 = sbr.rel (%p178) target = $region36
      $region35: #{tpu_custom_call.1} parent=31 // pred_region
        %p181 = scmp.lt.s32.totalorder %s11, 1
        %s182 = scalar_select %p181, %s11, 1
        %s183 = smul.addr %s182, 9
        %s184 = smul.addr %s183, 4
        %s185 = scalar_lea.vmem %s0, %s184
      $region36: #{tpu_custom_call.1} parent=31 // pred_fallthru
        _
    $region32: #{tpu_custom_call.1} parent=5 // pred_fallthru
      _
    %p186 = scmp.le.s32.totalorder 1, %s11
    %p187 = scmp.lt.s32.totalorder %s11, 3
    %p188 = pnand %p186, %p187
    %p189 = pneg %p188
    // Predicated region
    $region37: #{tpu_custom_call.1} parent=5 // pred_check
      _
    $region38: #{tpu_custom_call.1} parent=5 // pred_check_branch
      %191 = sbr.rel (%p188) target = $region40
    $region39: #{tpu_custom_call.1} parent=5 // pred_region
      %s192 = ssub.s32 %s11, 1
      %p193 = scmp.lt.s32.totalorder %s16, 1
      %s194 = scalar_select %p193, %s16, 1
      %s195 = smul.addr %s194, 9
      %s196 = smul.addr %s195, 4
      %s197 = scalar_lea.vmem %s0, %s196
      %p198 = pneg %p37
      %p199 = pneg %p34
      %p200 = pneg %p58
      %p201 = pneg %p55
      %p202 = pneg %p79
      %p203 = pneg %p76
      %p204 = pneg %p100
      %p205 = pneg %p97
      %p206 = pneg %p121
      %p207 = pneg %p118
      %p208 = pneg %p147
      %p209 = pneg %p144
      %p210 = scmp.lt.s32.totalorder %s16, 1
      %s211 = scalar_select %p210, %s16, 1
      %s212 = smul.addr %s211, 9
      %s213 = smul.addr %s212, 4
      %s214 = scalar_lea.vmem %s5, %s213
      %p215 = scmp.lt.s32.totalorder %s16, 1
      %s216 = scalar_select %p215, %s16, 1
      %s217 = smul.addr %s216, 9
      %s218 = smul.addr %s217, 4
      %s219 = scalar_lea.vmem %s0, %s218
      %p220 = scmp.lt.s32.totalorder %s16, 1
      %s221 = scalar_select %p220, %s16, 1
      %s222 = smul.addr %s221, 9
      %s223 = smul.addr %s222, 4
      %s224 = scalar_lea.vmem %s5, %s223
      %v226 = vld [vmem:[%s219] sm:$0xf]
      %v227 = vld [vmem:[%s219 + $0x4] sm:$0xf]
      %v228 = vld [vmem:[%s219 + $0x8] sm:$0xf]
      %v229 = vld [vmem:[%s219 + $0xc] sm:$0xf]
      %v230 = vld [vmem:[%s219 + $0x10] sm:$0xf]
      %v231 = vld [vmem:[%s219 + $0x14] sm:$0xf]
      %v232 = vld [vmem:[%s219 + $0x18] sm:$0xf]
      %v233 = vld [vmem:[%s219 + $0x1c] sm:$0xf]
      %v234 = vld [vmem:[%s219 + $0x20] sm:$0x1]
      %v235 = vld [vmem:[%s1] sm:$0xf]
      %v236 = vld [vmem:[%s1 + $0x4] sm:$0xf]
      %v237 = vld [vmem:[%s1 + $0x8] sm:$0xf]
      %v238 = vld [vmem:[%s1 + $0xc] sm:$0xf]
      %v239 = vld [vmem:[%s1 + $0x10] sm:$0xf]
      %v240 = vld [vmem:[%s1 + $0x14] sm:$0xf]
      %v241 = vld [vmem:[%s1 + $0x18] sm:$0xf]
      %v242 = vld [vmem:[%s1 + $0x1c] sm:$0xf]
      %v243 = vld [vmem:[%s1 + $0x20] sm:$0xf]
      %v244 = vld [vmem:[%s1 + $0x24] sm:$0xf]
      %v245 = vld [vmem:[%s1 + $0x28] sm:$0xf]
      %v246 = vld [vmem:[%s1 + $0x2c] sm:$0xf]
      %v247 = vld [vmem:[%s1 + $0x30] sm:$0xf]
      %v248 = vld [vmem:[%s1 + $0x34] sm:$0xf]
      %v249 = vld [vmem:[%s1 + $0x38] sm:$0xf]
      %v250 = vld [vmem:[%s1 + $0x3c] sm:$0xf]
      %v251 = vld [vmem:[%s2] sm:$0xff]
      %v252 = vld [vmem:[%s2 + $0x8] sm:$0xff]
      %v253 = vld [vmem:[%s2 + $0x10] sm:$0xff]
      %v254 = vld [vmem:[%s2 + $0x18] sm:$0xff]
      %v255 = vld [vmem:[%s2 + $0x20] sm:$0xff]
      %v256 = vld [vmem:[%s2 + $0x28] sm:$0xff]
      %v257 = vld [vmem:[%s2 + $0x30] sm:$0xff]
      %v258 = vld [vmem:[%s2 + $0x38] sm:$0xff]
      %v259 = vld [vmem:[%s2 + $0x40] sm:$0x1]
      %v269 = vunpack.c.l.b16 %v226
      %v270 = vunpack.c.l.b16 %v227
      %v271 = vunpack.c.l.b16 %v228
      %v272 = vunpack.c.l.b16 %v229
      %v273 = vunpack.c.l.b16 %v230
      %v274 = vunpack.c.l.b16 %v231
      %v275 = vunpack.c.l.b16 %v232
      %v276 = vunpack.c.l.b16 %v233
      %v277 = vunpack.c.l.b16 %v234
      %v278 = vpack.c.b16 %v270, %v269
      %v279 = vpack.c.b16 %v272, %v271
      %v280 = vpack.c.b16 %v274, %v273
      %v281 = vpack.c.b16 %v276, %v275
      %v282 = vpack.c.b16 %v277, %v277
      %v304 = vunpack.c.l.b16 %v235
      %v305 = vunpack.c.l.b16 %v236
      %v306 = vunpack.c.l.b16 %v237
      %v307 = vunpack.c.l.b16 %v238
      %v308 = vunpack.c.l.b16 %v239
      %v309 = vunpack.c.l.b16 %v240
      %v310 = vunpack.c.l.b16 %v241
      %v311 = vunpack.c.l.b16 %v242
      %v312 = vunpack.c.l.b16 %v243
      %v313 = vunpack.c.l.b16 %v244
      %v314 = vunpack.c.l.b16 %v245
      %v315 = vunpack.c.l.b16 %v246
      %v316 = vunpack.c.l.b16 %v247
      %v317 = vunpack.c.l.b16 %v248
      %v318 = vunpack.c.l.b16 %v249
      %v319 = vunpack.c.l.b16 %v250
      %v320 = vpack.c.b16 %v305, %v304
      %v321 = vpack.c.b16 %v307, %v306
      %v322 = vpack.c.b16 %v309, %v308
      %v323 = vpack.c.b16 %v311, %v310
      %v324 = vpack.c.b16 %v313, %v312
      %v325 = vpack.c.b16 %v315, %v314
      %v326 = vpack.c.b16 %v317, %v316
      %v327 = vpack.c.b16 %v319, %v318
      %336 = vmatprep.subr.bf16.mxu0 0
      %337 = vmatpush1.bf16.msra.mxu0 %v327
      %338 = vmatprep.subr.bf16.mxu0 0
      %339 = vmatpush1.bf16.msra.mxu0 %v326
      %340 = vmatprep.subr.bf16.mxu0 0
      %341 = vmatpush1.bf16.msra.mxu0 %v325
      %342 = vmatprep.subr.bf16.mxu0 0
      %343 = vmatpush1.bf16.msra.mxu0 %v324
      %344 = vmatprep.subr.bf16.mxu0 0
      %345 = vmatpush1.bf16.msra.mxu0 %v323
      %346 = vmatprep.subr.bf16.mxu0 0
      %347 = vmatpush1.bf16.msra.mxu0 %v322
      %348 = vmatprep.subr.bf16.mxu0 0
      %349 = vmatpush1.bf16.msra.mxu0 %v321
      %350 = vmatprep.subr.bf16.mxu0 0
      %351 = vmatpush1.bf16.msra.mxu0 %v320
      %352 = vmatprep.subr.bf16.mxu0 0
      %353 = vmatpush2.bf16.msra.mxu0 0
      %354 = vmatprep.subr.bf16.mxu0 0
      %355 = vmatpush2.bf16.msra.mxu0 0
      %356 = vmatprep.subr.bf16.mxu0 0
      %357 = vmatpush2.bf16.msra.mxu0 0
      %358 = vmatprep.subr.bf16.mxu0 0
      %359 = vmatpush2.bf16.msra.mxu0 0
      %360 = vmatprep.subr.bf16.mxu0 0
      %361 = vmatpush2.bf16.msra.mxu0 0
      %362 = vmatprep.subr.bf16.mxu0 0
      %363 = vmatpush2.bf16.msra.mxu0 0
      %364 = vmatprep.subr.bf16.mxu0 0
      %365 = vmatpush2.bf16.msra.mxu0 0
      %366 = vmatprep.subr.bf16.mxu0 0
      %367 = vmatpush2.bf16.msra.mxu0 0
      %368 = vmatprep.mubr.bf16.mxu0 0
      %369 = vmatmul.mubr.bf16.gmra.mxu0 %v278
      %v370 = vpop.f32.mrf.mxu0
      %v371 = vadd.f32 %v251, %v370
      %v372 = vpop.f32.mrf.mxu0
      %v373 = vpop.f32.mrf.mxu0
      %v374 = vadd.f32 %v252, %v373
      %v375 = vpop.f32.mrf.mxu0
      %376 = vmatprep.mubr.bf16.mxu0 0
      %377 = vmatmul.mubr.bf16.gmra.mxu0 %v279
      %v378 = vpop.f32.mrf.mxu0
      %v379 = vadd.f32 %v253, %v378
      %v380 = vpop.f32.mrf.mxu0
      %v381 = vpop.f32.mrf.mxu0
      %v382 = vadd.f32 %v254, %v381
      %v383 = vpop.f32.mrf.mxu0
      %384 = vmatprep.mubr.bf16.mxu0 0
      %385 = vmatmul.mubr.bf16.gmra.mxu0 %v280
      %v386 = vpop.f32.mrf.mxu0
      %v387 = vadd.f32 %v255, %v386
      %v388 = vpop.f32.mrf.mxu0
      %v389 = vpop.f32.mrf.mxu0
      %v390 = vadd.f32 %v256, %v389
      %v391 = vpop.f32.mrf.mxu0
      %392 = vmatprep.mubr.bf16.mxu0 0
      %393 = vmatmul.mubr.bf16.gmra.mxu0 %v281
      %v394 = vpop.f32.mrf.mxu0
      %v395 = vadd.f32 %v257, %v394
      %v396 = vpop.f32.mrf.mxu0
      %v397 = vpop.f32.mrf.mxu0
      %v398 = vadd.f32 %v258, %v397
      %v399 = vpop.f32.mrf.mxu0
      %400 = vmatprep.mubr.bf16.mxu0 0
      %401 = vmatmul.mubr.bf16.gmra.mxu0 %v282
      %v402 = vpop.f32.mrf.mxu0
      %v403 = vadd.f32 %v259, %v402
      %v404 = vpop.f32.mrf.mxu0
      %v405 = vpop.f32.mrf.mxu0
      %v406 = vpop.f32.mrf.mxu0
      %407 = vdwg.mxu0
      %408 = vadd.xlane.f32.xlu0 %v371
      %v409 = vpop.xlane.xlu0 %408
      %410 = vadd.xlane.f32.xlu0 %v374
      %v411 = vpop.xlane.xlu0 %410
      %412 = vadd.xlane.f32.xlu0 %v379
      %v413 = vpop.xlane.xlu0 %412
      %414 = vadd.xlane.f32.xlu0 %v382
      %v415 = vpop.xlane.xlu0 %414
      %416 = vadd.xlane.f32.xlu0 %v387
      %v417 = vpop.xlane.xlu0 %416
      %418 = vadd.xlane.f32.xlu0 %v390
      %v419 = vpop.xlane.xlu0 %418
      %420 = vadd.xlane.f32.xlu0 %v395
      %v421 = vpop.xlane.xlu0 %420
      %422 = vadd.xlane.f32.xlu0 %v398
      %v423 = vpop.xlane.xlu0 %422
      %vm424 = vcmask 1040384
      %v425 = vsel %vm424, %v403, 0.0
      %426 = vadd.xlane.f32.xlu0 %v425
      %v427 = vpop.xlane.xlu0 %426
      %v428 = vrcp.pop 128.0
      %v429 = vmul.f32 %v409, %v428
      %v430 = vmul.f32 %v411, %v428
      %v431 = vmul.f32 %v413, %v428
      %v432 = vmul.f32 %v415, %v428
      %v433 = vmul.f32 %v417, %v428
      %v434 = vmul.f32 %v419, %v428
      %v435 = vmul.f32 %v421, %v428
      %v436 = vmul.f32 %v423, %v428
      %v437 = vmul.f32 %v427, %v428
      %v438 = vsub.f32 %v371, %v429
      %v439 = vsub.f32 %v374, %v430
      %v440 = vsub.f32 %v379, %v431
      %v441 = vsub.f32 %v382, %v432
      %v442 = vsub.f32 %v387, %v433
      %v443 = vsub.f32 %v390, %v434
      %v444 = vsub.f32 %v395, %v435
      %v445 = vsub.f32 %v398, %v436
      %v446 = vsub.f32 %v403, %v437
      %v447 = vmul.f32 %v438, %v438
      %v448 = vmul.f32 %v439, %v439
      %v449 = vmul.f32 %v440, %v440
      %v450 = vmul.f32 %v441, %v441
      %v451 = vmul.f32 %v442, %v442
      %v452 = vmul.f32 %v443, %v443
      %v453 = vmul.f32 %v444, %v444
      %v454 = vmul.f32 %v445, %v445
      %v455 = vmul.f32 %v446, %v446
      %456 = vadd.xlane.f32.xlu0 %v447
      %v457 = vpop.xlane.xlu0 %456
      %458 = vadd.xlane.f32.xlu0 %v448
      %v459 = vpop.xlane.xlu0 %458
      %460 = vadd.xlane.f32.xlu0 %v449
      %v461 = vpop.xlane.xlu0 %460
      %462 = vadd.xlane.f32.xlu0 %v450
      %v463 = vpop.xlane.xlu0 %462
      %464 = vadd.xlane.f32.xlu0 %v451
      %v465 = vpop.xlane.xlu0 %464
      %466 = vadd.xlane.f32.xlu0 %v452
      %v467 = vpop.xlane.xlu0 %466
      %468 = vadd.xlane.f32.xlu0 %v453
      %v469 = vpop.xlane.xlu0 %468
      %470 = vadd.xlane.f32.xlu0 %v454
      %v471 = vpop.xlane.xlu0 %470
      %v472 = vsel %vm424, %v455, 0.0
      %473 = vadd.xlane.f32.xlu0 %v472
      %v474 = vpop.xlane.xlu0 %473
      %v475 = vmul.f32 %v457, %v428
      %v476 = vmul.f32 %v459, %v428
      %v477 = vmul.f32 %v461, %v428
      %v478 = vmul.f32 %v463, %v428
      %v479 = vmul.f32 %v465, %v428
      %v480 = vmul.f32 %v467, %v428
      %v481 = vmul.f32 %v469, %v428
      %v482 = vmul.f32 %v471, %v428
      %v483 = vmul.f32 %v474, %v428
      %v484 = vadd.f32 %v475, 1e-05
      %v485 = vadd.f32 %v476, 1e-05
      %v486 = vadd.f32 %v477, 1e-05
      %v487 = vadd.f32 %v478, 1e-05
      %v488 = vadd.f32 %v479, 1e-05
      %v489 = vadd.f32 %v480, 1e-05
      %v490 = vadd.f32 %v481, 1e-05
      %v491 = vadd.f32 %v482, 1e-05
      %v492 = vadd.f32 %v483, 1e-05
      %v493 = vrsqrt.pop %v484
      %v494 = vrsqrt.pop %v485
      %v495 = vrsqrt.pop %v486
      %v496 = vrsqrt.pop %v487
      %v497 = vrsqrt.pop %v488
      %v498 = vrsqrt.pop %v489
      %v499 = vrsqrt.pop %v490
      %v500 = vrsqrt.pop %v491
      %v501 = vrsqrt.pop %v492
      %v502 = vmul.f32 %v438, %v493
      %v503 = vmul.f32 %v439, %v494
      %v504 = vmul.f32 %v440, %v495
      %v505 = vmul.f32 %v441, %v496
      %v506 = vmul.f32 %v442, %v497
      %v507 = vmul.f32 %v443, %v498
      %v508 = vmul.f32 %v444, %v499
      %v509 = vmul.f32 %v445, %v500
      %v510 = vmul.f32 %v446, %v501
      %v511 = vld [vmem:[%s3] sm:$0x1]
      %v513 = vlaneseq
      %v514 = vshrl.u32 %v513, 7
      %v515 = vsub.s32 0, %v514
      %v516 = vrot.slane %v511, %v515
      %v518 = vmul.f32 %v502, %v516
      %v519 = vmul.f32 %v503, %v516
      %v520 = vmul.f32 %v504, %v516
      %v521 = vmul.f32 %v505, %v516
      %v522 = vmul.f32 %v506, %v516
      %v523 = vmul.f32 %v507, %v516
      %v524 = vmul.f32 %v508, %v516
      %v525 = vmul.f32 %v509, %v516
      %v526 = vmul.f32 %v510, %v516
      %v527 = vld [vmem:[%s4] sm:$0x1]
      %v529 = vlaneseq
      %v530 = vshrl.u32 %v529, 7
      %v531 = vsub.s32 0, %v530
      %v532 = vrot.slane %v527, %v531
      %v534 = vadd.f32 %v518, %v532
      %v535 = vadd.f32 %v519, %v532
      %v536 = vadd.f32 %v520, %v532
      %v537 = vadd.f32 %v521, %v532
      %v538 = vadd.f32 %v522, %v532
      %v539 = vadd.f32 %v523, %v532
      %v540 = vadd.f32 %v524, %v532
      %v541 = vadd.f32 %v525, %v532
      %v542 = vadd.f32 %v526, %v532
      %v543 = vpack.c.bf16 %v535, %v534
      %v544 = vpack.c.bf16 %v537, %v536
      %v545 = vpack.c.bf16 %v539, %v538
      %v546 = vpack.c.bf16 %v541, %v540
      %v547 = vpack.c.bf16 %v542, %v542
      %v553 = vunpack.c.l.b16 %v543
      %v554 = vunpack.c.h.b16 %v543
      %v555 = vunpack.c.l.b16 %v544
      %v556 = vunpack.c.h.b16 %v544
      %v557 = vunpack.c.l.b16 %v545
      %v558 = vunpack.c.h.b16 %v545
      %v559 = vunpack.c.l.b16 %v546
      %v560 = vunpack.c.h.b16 %v546
      %v561 = vunpack.c.l.b16 %v547
      %v562 = vpack.c.b16 %v553, %v553
      %v563 = vpack.c.b16 %v554, %v554
      %v564 = vpack.c.b16 %v555, %v555
      %v565 = vpack.c.b16 %v556, %v556
      %v566 = vpack.c.b16 %v557, %v557
      %v567 = vpack.c.b16 %v558, %v558
      %v568 = vpack.c.b16 %v559, %v559
      %v569 = vpack.c.b16 %v560, %v560
      %v570 = vpack.c.b16 %v561, %v561
      %580 = vst [vmem:[%s224] sm:$0xf] %v562
      %581 = vst [vmem:[%s224 + $0x4] sm:$0xf] %v563
      %582 = vst [vmem:[%s224 + $0x8] sm:$0xf] %v564
      %583 = vst [vmem:[%s224 + $0xc] sm:$0xf] %v565
      %584 = vst [vmem:[%s224 + $0x10] sm:$0xf] %v566
      %585 = vst [vmem:[%s224 + $0x14] sm:$0xf] %v567
      %586 = vst [vmem:[%s224 + $0x18] sm:$0xf] %v568
      %587 = vst [vmem:[%s224 + $0x1c] sm:$0xf] %v569
      %vm588 = vcmask 1040384
      %vm589 = vsmask.f32 256
      %vm590 = vmand %vm588, %vm589
      %v591 = vld [vmem:[%s224 + $0x20] sm:$0x1]
      %v592 = vsel %vm590, %v570, %v591
      %593 = vst [vmem:[%s224 + $0x20] sm:$0x1] %v592
      %p594 = scmp.lt.s32.totalorder %s16, 1
      %s595 = scalar_select %p594, %s16, 1
      %s596 = smul.addr %s595, 9
      %s597 = smul.addr %s596, 4
      %s598 = scalar_lea.vmem %s5, %s597
      // Predicated region
      $region41: #{tpu_custom_call.1} parent=39 // pred_check
        %p599 = pneg %p144
      $region42: #{tpu_custom_call.1} parent=39 // pred_check_branch
        %601 = sbr.rel (%p599) target = $region44
      $region43: #{tpu_custom_call.1} parent=39 // pred_region
        _
      $region44: #{tpu_custom_call.1} parent=39 // pred_fallthru
        _
    $region40: #{tpu_custom_call.1} parent=5 // pred_fallthru
      _
    %p602 = scmp.le.s32.totalorder 2, %s11
    // Predicated region
    $region45: #{tpu_custom_call.1} parent=5 // pred_check
      %p603 = pneg %p602
    $region46: #{tpu_custom_call.1} parent=5 // pred_check_branch
      %605 = sbr.rel (%p603) target = $region48
    $region47: #{tpu_custom_call.1} parent=5 // pred_region
      %s606 = ssub.s32 %s11, 2
      // Predicated region
      $region49: #{tpu_custom_call.1} parent=47 // pred_check
        %p607 = pneg %p150
      $region50: #{tpu_custom_call.1} parent=47 // pred_check_branch
        %609 = sbr.rel (%p607) target = $region52
      $region51: #{tpu_custom_call.1} parent=47 // pred_region
        %p610 = scmp.lt.s32.totalorder %s17, 1
        %s611 = scalar_select %p610, %s17, 1
        %s612 = smul.addr %s611, 9
        %s613 = smul.addr %s612, 4
        %s614 = scalar_lea.vmem %s5, %s613
      $region52: #{tpu_custom_call.1} parent=47 // pred_fallthru
        _
    $region48: #{tpu_custom_call.1} parent=5 // pred_fallthru
      _
  $region6: #{tpu_custom_call.1} parent=0 // loop_footer
    %s15 = sadd.s32 1, %s11
  $region7: #{tpu_custom_call.1} parent=0 // loop_footer_branch
    %10 = sbr.rel target = $region3
  $region8: #{tpu_custom_call.1} parent=0 // loop_exit
    _

</llo_original>
